<compile_context>
chip_gen: v7x
topology: tpu7x:2x2x1
jax: 0.10.0
libtpu: 0.0.40
codegen_flags: <defaults>
</compile_context>

<pallas_src>
import functools

import jax
import jax.numpy as jnp
from jax.experimental import pallas as pl
from jax.experimental.pallas import tpu as pltpu


def _round_up(n, m):
    return ((n + m - 1) // m) * m


def _fastkan_kernel(x_ref, gamma_ref, beta_ref, grid_row_ref, w_ref, bb_ref,
                    o_ref, *, eps, num_grids):
    # x_ref:        (tm, H)          float32  input rows
    # gamma_ref:    (1, H)           float32  layernorm scale, pre-divided by denom
    # beta_ref:     (1, H)           float32  layernorm shift, pre-divided by denom
    # grid_row_ref: (1, G*H)         float32  grid[g]/denom replicated H times (g-major)
    # w_ref:        (G*H + H, D_out) float32  fused [spline ; base] weight
    # bb_ref:       (1, D_out)       float32  base bias
    # o_ref:        (tm, D_out)      float32  fused output
    x = x_ref[...]                                            # (tm, H)

    # --- LayerNorm(x); 1/denominator is folded into gamma/beta, so `ys` is
    # already the scaled RBF argument y/denom. ---
    mean = jnp.mean(x, axis=-1, keepdims=True)
    xc = x - mean
    var = jnp.mean(xc * xc, axis=-1, keepdims=True)
    ys = xc * jax.lax.rsqrt(var + eps) * gamma_ref[...] + beta_ref[...]   # (tm, H)

    # --- lane-dense RBF basis: one (tm, G*H) tensor, one exp ---
    ys_rep = jnp.concatenate([ys] * num_grids, axis=-1)       # (tm, G*H)
    d = ys_rep - grid_row_ref[...]                            # (y - grid_g)/denom
    basis = jnp.exp(-(d * d))                                 # (tm, G*H)

    # --- base branch activation, appended as an extra H-wide block so the whole
    # layer is a single K = G*H + H MXU contraction ---
    silu_x = x * jax.nn.sigmoid(x)                            # (tm, H)
    acts = jnp.concatenate([basis, silu_x], axis=-1)          # (tm, G*H + H)

    acc = jnp.dot(acts, w_ref[...], preferred_element_type=jnp.float32)
    o_ref[...] = (acc + bb_ref[...]).astype(o_ref.dtype)


def fastkan_layer(x, gamma, beta, w_spline, w_base, b_base, grid, denominator,
                  *, eps=1e-5, tm=1024):
    """Fused FastKANLayer forward.

    x:          (..., H) float32
    gamma,beta: (H,)     layernorm params
    w_spline:   (H*G, D_out)  (row k = h*G + g, matching the PyTorch .view flatten)
    w_base:     (H, D_out), b_base: (D_out,)
    grid:       (G,) float32
    denominator: python float (as in the PyTorch module); traced scalar also works
    returns     (..., D_out) float32
    """
    orig_shape = x.shape
    H = int(orig_shape[-1])
    G = int(grid.shape[0])
    D_out = int(w_base.shape[1])
    GH = G * H
    K = GH + H

    x2 = x.reshape(-1, H).astype(jnp.float32)
    N = x2.shape[0]
    rows = max(8, _round_up(N, 8))

    # --- row tile selection ---
    tm_eff = min(tm, rows)
    # v7x megacore: keep >= 2 grid steps so the "parallel" row axis can shard
    # across both TensorCores (no effect on single-TC v5e/v6e).
    if rows >= 16:
        tm_eff = min(tm_eff, _round_up(pl.cdiv(rows, 2), 8))
    # Keep double-buffered row tiles + resident weights + in-kernel f32
    # intermediates comfortably inside the default scoped VMEM on all gens.
    weight_bytes = 4 * (K * D_out + D_out + 2 * H + GH)

    def tile_bytes(t):
        # double-buffered in/out row tiles + rough bound on (tm, K) intermediates
        return 4 * (2 * t * (H + D_out) + 3 * t * K)

    budget = 14 * 1024 * 1024
    while tm_eff > 8 and weight_bytes + tile_bytes(tm_eff) > budget:
        tm_eff //= 2
    tm_eff = max(8, _round_up(tm_eff, 8))
    # TODO(synk): if the fused weight alone exceeds VMEM (very large H*G*D_out),
    # add a K-reduction grid axis (marked "arbitrary", placed last) instead of
    # shrinking tm.

    N_pad = _round_up(N, tm_eff)
    if N_pad != N:
        x2 = jnp.pad(x2, ((0, N_pad - N), (0, 0)))

    inv_den = 1.0 / denominator

    # Spline weight (H*G, D_out) -> g-major (G*H, D_out): row g*H+h is the
    # PyTorch row h*G+g (matches spline_basis.view(..., -1)); append the base
    # weight so the kernel does a single K = G*H + H contraction.
    ws = (w_spline.astype(jnp.float32)
          .reshape(H, G, D_out).transpose(1, 0, 2).reshape(GH, D_out))
    w_fused = jnp.concatenate([ws, w_base.astype(jnp.float32)], axis=0)  # (K, D_out)

    # All constants prepared on device (no jax.device_get / host sync).
    gamma2 = (gamma.astype(jnp.float32) * inv_den).reshape(1, H)
    beta2 = (beta.astype(jnp.float32) * inv_den).reshape(1, H)
    grid_row = jnp.repeat(grid.astype(jnp.float32) * inv_den, H).reshape(1, GH)
    bb2 = b_base.reshape(1, D_out).astype(jnp.float32)

    kernel = functools.partial(_fastkan_kernel, eps=float(eps), num_grids=G)

    out = pl.pallas_call(
        kernel,
        out_shape=jax.ShapeDtypeStruct((N_pad, D_out), jnp.float32),
        grid_spec=pltpu.PrefetchScalarGridSpec(
            num_scalar_prefetch=0,
            grid=(N_pad // tm_eff,),
            in_specs=[
                pl.BlockSpec((tm_eff, H), lambda i: (i, 0)),      # x rows
                pl.BlockSpec((1, H), lambda i: (0, 0)),           # gamma / denom
                pl.BlockSpec((1, H), lambda i: (0, 0)),           # beta / denom
                pl.BlockSpec((1, GH), lambda i: (0, 0)),          # grid row / denom
                pl.BlockSpec((K, D_out), lambda i: (0, 0)),       # fused weight
                pl.BlockSpec((1, D_out), lambda i: (0, 0)),       # base bias
            ],
            out_specs=pl.BlockSpec((tm_eff, D_out), lambda i: (i, 0)),
        ),
        compiler_params=pltpu.CompilerParams(
            dimension_semantics=("parallel",),   # shards rows across v7x's 2 TCs
        ),
    )(x2, gamma2, beta2, grid_row, w_fused, bb2)

    out = out[:N]
    return out.reshape(*orig_shape[:-1], D_out)


if __name__ == "__main__":
    # Module hyper-params
    grid_min, grid_max, num_grids = -2.0, 2.0, 8
    input_dim, output_dim = 32, 64
    batch, seq = 2, 8
    eps = 1e-5

    grid = jnp.linspace(grid_min, grid_max, num_grids, dtype=jnp.float32)
    denominator = (grid_max - grid_min) / (num_grids - 1)

    # Deterministic params / input
    key = jax.random.PRNGKey(0)
    kx, kg, kb, kws, kwb, kbb = jax.random.split(key, 6)
    x = jax.random.normal(kx, (batch, seq, input_dim), dtype=jnp.float32)
    gamma = 1.0 + 0.1 * jax.random.normal(kg, (input_dim,), dtype=jnp.float32)
    beta = 0.1 * jax.random.normal(kb, (input_dim,), dtype=jnp.float32)
    w_spline = 0.1 * jax.random.normal(
        kws, (input_dim * num_grids, output_dim), dtype=jnp.float32)
    w_base = 0.1 * jax.random.normal(kwb, (input_dim, output_dim), dtype=jnp.float32)
    b_base = 0.1 * jax.random.normal(kbb, (output_dim,), dtype=jnp.float32)

    out = fastkan_layer(x, gamma, beta, w_spline, w_base, b_base, grid, denominator,
                        eps=eps)
    out = jax.block_until_ready(out)

    # Pure-JAX reference of FastKANLayer.forward (time_benchmark=False)
    mean = jnp.mean(x, axis=-1, keepdims=True)
    var = jnp.mean((x - mean) ** 2, axis=-1, keepdims=True)
    y = (x - mean) / jnp.sqrt(var + eps) * gamma + beta
    basis = jnp.exp(-(((y[..., None] - grid) / denominator) ** 2))      # (B,S,H,G)
    basis2 = basis.reshape(*basis.shape[:-2], input_dim * num_grids)
    ret = jnp.dot(basis2, w_spline, precision=jax.lax.Precision.HIGHEST)
    base = jnp.dot(jax.nn.silu(x), w_base,
                   precision=jax.lax.Precision.HIGHEST) + b_base
    ref = ret + base

    assert out.shape == (batch, seq, output_dim)
    assert jnp.allclose(out, ref, atol=2e-3, rtol=2e-3), \
        float(jnp.max(jnp.abs(out - ref)))

    print("KERNEL_OK")
</pallas_src>

<mosaic_0001>
module attributes {stable_mosaic.version = 11 : i64} {
  func.func @_fastkan_kernel(%arg0: i32, %arg1: memref<8x32xf32, #tpu.memory_space<vmem>>, %arg2: memref<1x32xf32, #tpu.memory_space<vmem>>, %arg3: memref<1x32xf32, #tpu.memory_space<vmem>>, %arg4: memref<1x256xf32, #tpu.memory_space<vmem>>, %arg5: memref<288x64xf32, #tpu.memory_space<vmem>>, %arg6: memref<1x64xf32, #tpu.memory_space<vmem>>, %arg7: memref<8x64xf32, #tpu.memory_space<vmem>>) attributes {dimension_semantics = [#tpu.dimension_semantics<parallel>], iteration_bounds = array<i64: 2>, scalar_prefetch = 0 : i64, scratch_operands = 0 : i64, tpu.core_type = #tpu.core_type<tc>, window_params = [{transform_indices = @transform_0, window_bounds = array<i64: 8, 32>}, {pipeline_mode = #tpu.pipeline_mode<synchronous>, transform_indices = @transform_1, window_bounds = array<i64: 1, 32>}, {pipeline_mode = #tpu.pipeline_mode<synchronous>, transform_indices = @transform_2, window_bounds = array<i64: 1, 32>}, {pipeline_mode = #tpu.pipeline_mode<synchronous>, transform_indices = @transform_3, window_bounds = array<i64: 1, 256>}, {pipeline_mode = #tpu.pipeline_mode<synchronous>, transform_indices = @transform_4, window_bounds = array<i64: 288, 64>}, {pipeline_mode = #tpu.pipeline_mode<synchronous>, transform_indices = @transform_5, window_bounds = array<i64: 1, 64>}, {transform_indices = @transform_6, window_bounds = array<i64: 8, 64>}]} {
    %c0 = arith.constant 0 : index
    %c0_0 = arith.constant 0 : index
    %0 = vector.load %arg1[%c0, %c0_0] : memref<8x32xf32, #tpu.memory_space<vmem>>, vector<8x32xf32>
    %cst = arith.constant dense<0.000000e+00> : vector<8xf32>
    %1 = vector.multi_reduction <add>, %0, %cst [1] : vector<8x32xf32> to vector<8xf32>
    %2 = vector.shape_cast %1 : vector<8xf32> to vector<8x1xf32>
    %cst_1 = arith.constant 3.200000e+01 : f32
    %3 = vector.broadcast %cst_1 : f32 to vector<8x1xf32>
    %4 = arith.divf %2, %3 : vector<8x1xf32>
    %5 = vector.broadcast %4 : vector<8x1xf32> to vector<8x32xf32>
    %6 = arith.subf %0, %5 : vector<8x32xf32>
    %7 = arith.mulf %6, %6 : vector<8x32xf32>
    %cst_2 = arith.constant dense<0.000000e+00> : vector<8xf32>
    %8 = vector.multi_reduction <add>, %7, %cst_2 [1] : vector<8x32xf32> to vector<8xf32>
    %9 = vector.shape_cast %8 : vector<8xf32> to vector<8x1xf32>
    %cst_3 = arith.constant 3.200000e+01 : f32
    %10 = vector.broadcast %cst_3 : f32 to vector<8x1xf32>
    %11 = arith.divf %9, %10 : vector<8x1xf32>
    %cst_4 = arith.constant 9.99999974E-6 : f32
    %12 = vector.broadcast %cst_4 : f32 to vector<8x1xf32>
    %13 = arith.addf %11, %12 : vector<8x1xf32>
    %14 = math.rsqrt %13 : vector<8x1xf32>
    %15 = vector.broadcast %14 : vector<8x1xf32> to vector<8x32xf32>
    %16 = arith.mulf %6, %15 : vector<8x32xf32>
    %c0_5 = arith.constant 0 : index
    %c0_6 = arith.constant 0 : index
    %17 = vector.load %arg2[%c0_5, %c0_6] : memref<1x32xf32, #tpu.memory_space<vmem>>, vector<1x32xf32>
    %18 = vector.broadcast %17 : vector<1x32xf32> to vector<8x32xf32>
    %19 = arith.mulf %16, %18 : vector<8x32xf32>
    %c0_7 = arith.constant 0 : index
    %c0_8 = arith.constant 0 : index
    %20 = vector.load %arg3[%c0_7, %c0_8] : memref<1x32xf32, #tpu.memory_space<vmem>>, vector<1x32xf32>
    %21 = vector.broadcast %20 : vector<1x32xf32> to vector<8x32xf32>
    %22 = arith.addf %19, %21 : vector<8x32xf32>
    %23 = tpu.concatenate %22, %22, %22, %22, %22, %22, %22, %22 in 1 : vector<8x32xf32>, vector<8x32xf32>, vector<8x32xf32>, vector<8x32xf32>, vector<8x32xf32>, vector<8x32xf32>, vector<8x32xf32>, vector<8x32xf32> -> vector<8x256xf32>
    %c0_9 = arith.constant 0 : index
    %c0_10 = arith.constant 0 : index
    %24 = vector.load %arg4[%c0_9, %c0_10] : memref<1x256xf32, #tpu.memory_space<vmem>>, vector<1x256xf32>
    %25 = vector.broadcast %24 : vector<1x256xf32> to vector<8x256xf32>
    %26 = arith.subf %23, %25 : vector<8x256xf32>
    %27 = arith.mulf %26, %26 : vector<8x256xf32>
    %cst_11 = arith.constant 0.000000e+00 : f32
    %28 = vector.broadcast %cst_11 : f32 to vector<8x256xf32>
    %29 = arith.subf %28, %27 : vector<8x256xf32>
    %30 = math.exp %29 : vector<8x256xf32>
    %31 = arith.negf %0 : vector<8x32xf32>
    %32 = math.exp %31 : vector<8x32xf32>
    %cst_12 = arith.constant 1.000000e+00 : f32
    %33 = vector.broadcast %cst_12 : f32 to vector<8x32xf32>
    %34 = arith.addf %33, %32 : vector<8x32xf32>
    %35 = arith.divf %33, %34 : vector<8x32xf32>
    %36 = arith.mulf %0, %35 : vector<8x32xf32>
    %37 = tpu.concatenate %30, %36 in 1 : vector<8x256xf32>, vector<8x32xf32> -> vector<8x288xf32>
    %c0_13 = arith.constant 0 : index
    %c0_14 = arith.constant 0 : index
    %38 = vector.load %arg5[%c0_13, %c0_14] : memref<288x64xf32, #tpu.memory_space<vmem>>, vector<288x64xf32>
    %cst_15 = arith.constant dense<0.000000e+00> : vector<8x64xf32>
    %39 = tpu.matmul %37, %38, %cst_15 {dimension_numbers = #tpu.dot_dimension_numbers<[1], [0], [0], [1], [0, 0, 1, 1], [], []>} : vector<8x288xf32>, vector<288x64xf32>, vector<8x64xf32> -> vector<8x64xf32>
    %c0_16 = arith.constant 0 : index
    %c0_17 = arith.constant 0 : index
    %40 = vector.load %arg6[%c0_16, %c0_17] : memref<1x64xf32, #tpu.memory_space<vmem>>, vector<1x64xf32>
    %41 = vector.broadcast %40 : vector<1x64xf32> to vector<8x64xf32>
    %42 = arith.addf %39, %41 : vector<8x64xf32>
    %c0_18 = arith.constant 0 : index
    %c0_19 = arith.constant 0 : index
    %43 = vector.load %arg7[%c0_18, %c0_19] : memref<8x64xf32, #tpu.memory_space<vmem>>, vector<8x64xf32>
    tpu.vector_store %arg7[%c0_18, %c0_19], %42 {strides = array<i32>} : memref<8x64xf32, #tpu.memory_space<vmem>>, vector<8x64xf32>,
    return
  }
  func.func @transform_0(%arg0: i32) -> (i32, i32) {
    %c0_i32 = arith.constant 0 : i32
    %c0_i32_0 = arith.constant 0 : i32
    return %arg0, %c0_i32 : i32, i32
  }
  func.func @transform_1(%arg0: i32) -> (i32, i32) {
    %c0_i32 = arith.constant 0 : i32
    %c0_i32_0 = arith.constant 0 : i32
    %c0_i32_1 = arith.constant 0 : i32
    return %c0_i32, %c0_i32_0 : i32, i32
  }
  func.func @transform_2(%arg0: i32) -> (i32, i32) {
    %c0_i32 = arith.constant 0 : i32
    %c0_i32_0 = arith.constant 0 : i32
    %c0_i32_1 = arith.constant 0 : i32
    return %c0_i32, %c0_i32_0 : i32, i32
  }
  func.func @transform_3(%arg0: i32) -> (i32, i32) {
    %c0_i32 = arith.constant 0 : i32
    %c0_i32_0 = arith.constant 0 : i32
    %c0_i32_1 = arith.constant 0 : i32
    return %c0_i32, %c0_i32_0 : i32, i32
  }
  func.func @transform_4(%arg0: i32) -> (i32, i32) {
    %c0_i32 = arith.constant 0 : i32
    %c0_i32_0 = arith.constant 0 : i32
    %c0_i32_1 = arith.constant 0 : i32
    return %c0_i32, %c0_i32_0 : i32, i32
  }
  func.func @transform_5(%arg0: i32) -> (i32, i32) {
    %c0_i32 = arith.constant 0 : i32
    %c0_i32_0 = arith.constant 0 : i32
    %c0_i32_1 = arith.constant 0 : i32
    return %c0_i32, %c0_i32_0 : i32, i32
  }
  func.func @transform_6(%arg0: i32) -> (i32, i32) {
    %c0_i32 = arith.constant 0 : i32
    %c0_i32_0 = arith.constant 0 : i32
    return %arg0, %c0_i32 : i32, i32
  }
}

</mosaic_0001>

<llo_original>
// kernel: tpu_custom_call.1
$region0: #{tpu_custom_call.1}
  #allocation0 [shape = 'u32[]', space=smem, size = 0x4, offset = 0x4, fixed_abs, tag = 'smem constant byte address 0x4 - core index']
  #allocation1 [shape = 'u32[144,128]{1,0:T(1,128)}', space=vmem, size = 0x12000, scoped, tag = 'internal scratch']
  %s0 = inlined_call_operand.vmem [shape: f32[16,32], index: 0, kind: input, shape index: {}]
  %s1 = inlined_call_operand.vmem [shape: f32[1,32], index: 1, kind: input, shape index: {}]
  %s2 = inlined_call_operand.vmem [shape: f32[1,32], index: 2, kind: input, shape index: {}]
  %s3 = inlined_call_operand.vmem [shape: f32[1,256], index: 3, kind: input, shape index: {}]
  %s4 = inlined_call_operand.vmem [shape: f32[288,64], index: 4, kind: input, shape index: {}]
  %s5 = inlined_call_operand.vmem [shape: f32[1,64], index: 5, kind: input, shape index: {}]
  %s6 = inlined_call_operand.hbm [shape: f32[16,64], index: 6, kind: output, shape index: {}]
  %s7 = sld [smem:[#allocation0]]
  $region57: #{tpu_custom_call.1} parent=0
    _
  %s9 = ssub.s32 1, %s7
  %s10 = scalar_select 0, %s9, %s7
  $region1: #{tpu_custom_call.1} parent=0
    #allocation2 [shape = 'u8[8192]{0}', space=vmem, size = 0x2000, scoped, tag = 'output window, operand 0']
    #allocation3 [shape = 's32[2]{0}', space=sflag, size = 0x8, scoped, tag = 'scoped memory for tpu_custom_call.1']
    %11 = vsyncpa [#allocation3], 0
    %s12 = scalar_lea.sflag [#allocation3], 1
    %13 = vsyncpa %s12, 0
    loop: start=0, step=1, limit=4
    $region2: #{tpu_custom_call.1} parent=1 // loop_pre_header
      _
    $region3: #{tpu_custom_call.1} parent=1 // loop_header
      %s15 = sphi 0, %s19
      %p16 = scmp.ge.s32.totalorder %s15, 4
      %s25 = sphi 0, %s27
      %s28 = sphi 0, %s25
      %s29 = sphi 0, %s28
      %s45 = sphi 0, %s29
      %s49 = sphi 0, %s49
      %s51 = sphi 0, %s49
      %s52 = sphi 0, %s51
      %s66 = sphi 0, %s52
      %s70 = sphi 0, %s70
      %s72 = sphi 0, %s70
      %s73 = sphi 0, %s72
      %s87 = sphi 0, %s73
      %s91 = sphi 0, %s91
      %s93 = sphi 0, %s91
      %s94 = sphi 0, %s93
      %s108 = sphi 0, %s94
      %s112 = sphi 0, %s112
      %s114 = sphi 0, %s112
      %s115 = sphi 0, %s114
      %s129 = sphi 0, %s115
      %s133 = sphi 0, %s133
      %s135 = sphi 0, %s133
      %s136 = sphi 0, %s135
      %s150 = sphi 0, %s136
      %s156 = sphi 0, %s158
      %s159 = sphi 0, %s156
      %s160 = sphi 0, %s159
      %s176 = sphi 0, %s160
    $region4: #{tpu_custom_call.1} parent=1 // loop_header_branch
      %18 = sbr.rel (%p16) target = $region8
    $region5: #{tpu_custom_call.1} parent=1 // loop_body
      %s20 = ssub.s32 %s15, 1
      %s21 = ssub.s32 %s15, 2
      %s22 = sadd.s32 %s15, 1
      %s23 = ssub.s32 %s15, %s22
      %p24 = scmp.eq.s32.totalorder %s23, 0
      %s26 = sadd.s32 %s25, 1
      %s27 = scalar_select %p24, %s25, %s26
      %p30 = pneg %p24
      %p31 = scmp.eq.s32.totalorder %s15, 1
      %p32 = por %p30, %p31
      %p33 = scmp.ne.s32.totalorder %s25, %s28
      %p34 = scmp.eq.s32.totalorder %s15, 0
      %p35 = por %p33, %p34
      %p36 = scmp.ne.s32.totalorder %s25, %s28
      %p37 = scmp.eq.s32.totalorder %s20, 1
      %p38 = por %p36, %p37
      %p39 = scmp.ne.s32.totalorder %s28, %s29
      %p40 = scmp.eq.s32.totalorder %s20, 0
      %p41 = por %p39, %p40
      %p42 = scmp.ne.s32.totalorder %s28, %s29
      %p43 = scmp.eq.s32.totalorder %s21, 1
      %p44 = por %p42, %p43
      %p46 = scmp.ne.s32.totalorder %s29, %s45
      %p47 = scmp.eq.s32.totalorder %s21, 0
      %p48 = por %p46, %p47
      %s50 = sadd.s32 %s49, 1
      %p53 = scmp.eq.s32.totalorder %s15, 1
      %p54 = scmp.ne.s32.totalorder %s49, %s51
      %p55 = scmp.eq.s32.totalorder %s15, 0
      %p56 = por %p54, %p55
      %p57 = scmp.ne.s32.totalorder %s49, %s51
      %p58 = scmp.eq.s32.totalorder %s20, 1
      %p59 = por %p57, %p58
      %p60 = scmp.ne.s32.totalorder %s51, %s52
      %p61 = scmp.eq.s32.totalorder %s20, 0
      %p62 = por %p60, %p61
      %p63 = scmp.ne.s32.totalorder %s51, %s52
      %p64 = scmp.eq.s32.totalorder %s21, 1
      %p65 = por %p63, %p64
      %p67 = scmp.ne.s32.totalorder %s52, %s66
      %p68 = scmp.eq.s32.totalorder %s21, 0
      %p69 = por %p67, %p68
      %s71 = sadd.s32 %s70, 1
      %p74 = scmp.eq.s32.totalorder %s15, 1
      %p75 = scmp.ne.s32.totalorder %s70, %s72
      %p76 = scmp.eq.s32.totalorder %s15, 0
      %p77 = por %p75, %p76
      %p78 = scmp.ne.s32.totalorder %s70, %s72
      %p79 = scmp.eq.s32.totalorder %s20, 1
      %p80 = por %p78, %p79
      %p81 = scmp.ne.s32.totalorder %s72, %s73
      %p82 = scmp.eq.s32.totalorder %s20, 0
      %p83 = por %p81, %p82
      %p84 = scmp.ne.s32.totalorder %s72, %s73
      %p85 = scmp.eq.s32.totalorder %s21, 1
      %p86 = por %p84, %p85
      %p88 = scmp.ne.s32.totalorder %s73, %s87
      %p89 = scmp.eq.s32.totalorder %s21, 0
      %p90 = por %p88, %p89
      %s92 = sadd.s32 %s91, 1
      %p95 = scmp.eq.s32.totalorder %s15, 1
      %p96 = scmp.ne.s32.totalorder %s91, %s93
      %p97 = scmp.eq.s32.totalorder %s15, 0
      %p98 = por %p96, %p97
      %p99 = scmp.ne.s32.totalorder %s91, %s93
      %p100 = scmp.eq.s32.totalorder %s20, 1
      %p101 = por %p99, %p100
      %p102 = scmp.ne.s32.totalorder %s93, %s94
      %p103 = scmp.eq.s32.totalorder %s20, 0
      %p104 = por %p102, %p103
      %p105 = scmp.ne.s32.totalorder %s93, %s94
      %p106 = scmp.eq.s32.totalorder %s21, 1
      %p107 = por %p105, %p106
      %p109 = scmp.ne.s32.totalorder %s94, %s108
      %p110 = scmp.eq.s32.totalorder %s21, 0
      %p111 = por %p109, %p110
      %s113 = sadd.s32 %s112, 1
      %p116 = scmp.eq.s32.totalorder %s15, 1
      %p117 = scmp.ne.s32.totalorder %s112, %s114
      %p118 = scmp.eq.s32.totalorder %s15, 0
      %p119 = por %p117, %p118
      %p120 = scmp.ne.s32.totalorder %s112, %s114
      %p121 = scmp.eq.s32.totalorder %s20, 1
      %p122 = por %p120, %p121
      %p123 = scmp.ne.s32.totalorder %s114, %s115
      %p124 = scmp.eq.s32.totalorder %s20, 0
      %p125 = por %p123, %p124
      %p126 = scmp.ne.s32.totalorder %s114, %s115
      %p127 = scmp.eq.s32.totalorder %s21, 1
      %p128 = por %p126, %p127
      %p130 = scmp.ne.s32.totalorder %s115, %s129
      %p131 = scmp.eq.s32.totalorder %s21, 0
      %p132 = por %p130, %p131
      %s134 = sadd.s32 %s133, 1
      %p137 = scmp.eq.s32.totalorder %s15, 1
      %p138 = scmp.ne.s32.totalorder %s133, %s135
      %p139 = scmp.eq.s32.totalorder %s15, 0
      %p140 = por %p138, %p139
      %p141 = scmp.ne.s32.totalorder %s133, %s135
      %p142 = scmp.eq.s32.totalorder %s20, 1
      %p143 = por %p141, %p142
      %p144 = scmp.ne.s32.totalorder %s135, %s136
      %p145 = scmp.eq.s32.totalorder %s20, 0
      %p146 = por %p144, %p145
      %p147 = scmp.ne.s32.totalorder %s135, %s136
      %p148 = scmp.eq.s32.totalorder %s21, 1
      %p149 = por %p147, %p148
      %p151 = scmp.ne.s32.totalorder %s136, %s150
      %p152 = scmp.eq.s32.totalorder %s21, 0
      %p153 = por %p151, %p152
      %s154 = ssub.s32 %s15, %s22
      %p155 = scmp.eq.s32.totalorder %s154, 0
      %s157 = sadd.s32 %s156, 1
      %s158 = scalar_select %p155, %s156, %s157
      %p161 = pneg %p155
      %p162 = scmp.eq.s32.totalorder %s15, 1
      %p163 = por %p161, %p162
      %p164 = scmp.ne.s32.totalorder %s156, %s159
      %p165 = scmp.eq.s32.totalorder %s15, 0
      %p166 = por %p164, %p165
      %p167 = scmp.ne.s32.totalorder %s156, %s159
      %p168 = scmp.eq.s32.totalorder %s20, 1
      %p169 = por %p167, %p168
      %p170 = scmp.ne.s32.totalorder %s159, %s160
      %p171 = scmp.eq.s32.totalorder %s20, 0
      %p172 = por %p170, %p171
      %p173 = scmp.ne.s32.totalorder %s159, %s160
      %p174 = scmp.eq.s32.totalorder %s21, 1
      %p175 = por %p173, %p174
      %p177 = scmp.ne.s32.totalorder %s160, %s176
      %p178 = scmp.eq.s32.totalorder %s21, 0
      %p179 = por %p177, %p178
      %p180 = scmp.le.s32.totalorder 1, %s15
      %p181 = scmp.lt.s32.totalorder %s15, 3
      %p182 = pnand %p180, %p181
      %p183 = pneg %p182
      // Predicated region
      $region9: #{tpu_custom_call.1} parent=5 // pred_check
        _
      $region10: #{tpu_custom_call.1} parent=5 // pred_check_branch
        %185 = sbr.rel (%p182) target = $region12
      $region11: #{tpu_custom_call.1} parent=5 // pred_region
        %s186 = ssub.s32 %s15, 1
        // Predicated region
        $region13: #{tpu_custom_call.1} parent=11 // pred_check
          %p187 = pneg %p62
        $region14: #{tpu_custom_call.1} parent=11 // pred_check_branch
          %189 = sbr.rel (%p187) target = $region16
        $region15: #{tpu_custom_call.1} parent=11 // pred_region
          _
        $region16: #{tpu_custom_call.1} parent=11 // pred_fallthru
          _
        // Predicated region
        $region17: #{tpu_custom_call.1} parent=11 // pred_check
          %p190 = pneg %p83
        $region18: #{tpu_custom_call.1} parent=11 // pred_check_branch
          %192 = sbr.rel (%p190) target = $region20
        $region19: #{tpu_custom_call.1} parent=11 // pred_region
          _
        $region20: #{tpu_custom_call.1} parent=11 // pred_fallthru
          _
        // Predicated region
        $region21: #{tpu_custom_call.1} parent=11 // pred_check
          %p193 = pneg %p104
        $region22: #{tpu_custom_call.1} parent=11 // pred_check_branch
          %195 = sbr.rel (%p193) target = $region24
        $region23: #{tpu_custom_call.1} parent=11 // pred_region
          _
        $region24: #{tpu_custom_call.1} parent=11 // pred_fallthru
          _
        // Predicated region
        $region25: #{tpu_custom_call.1} parent=11 // pred_check
          %p196 = pneg %p125
        $region26: #{tpu_custom_call.1} parent=11 // pred_check_branch
          %198 = sbr.rel (%p196) target = $region28
        $region27: #{tpu_custom_call.1} parent=11 // pred_region
          _
        $region28: #{tpu_custom_call.1} parent=11 // pred_fallthru
          _
        // Predicated region
        $region29: #{tpu_custom_call.1} parent=11 // pred_check
          %p199 = pneg %p146
        $region30: #{tpu_custom_call.1} parent=11 // pred_check_branch
          %201 = sbr.rel (%p199) target = $region32
        $region31: #{tpu_custom_call.1} parent=11 // pred_region
          _
        $region32: #{tpu_custom_call.1} parent=11 // pred_fallthru
          _
      $region12: #{tpu_custom_call.1} parent=5 // pred_fallthru
        _
      %p202 = scmp.lt.s32.totalorder %s15, 2
      // Predicated region
      $region33: #{tpu_custom_call.1} parent=5 // pred_check
        %p203 = pneg %p202
      $region34: #{tpu_custom_call.1} parent=5 // pred_check_branch
        %205 = sbr.rel (%p203) target = $region36
      $region35: #{tpu_custom_call.1} parent=5 // pred_region
        // Predicated region
        $region37: #{tpu_custom_call.1} parent=35 // pred_check
          %p206 = pneg %p35
        $region38: #{tpu_custom_call.1} parent=35 // pred_check_branch
          %208 = sbr.rel (%p206) target = $region40
        $region39: #{tpu_custom_call.1} parent=35 // pred_region
          %p209 = scmp.lt.s32.totalorder %s15, 1
          %s210 = scalar_select %p209, %s15, 1
          %s211 = smul.addr %s210, 8
          %s212 = scalar_lea.vmem %s0, %s211
        $region40: #{tpu_custom_call.1} parent=35 // pred_fallthru
          _
      $region36: #{tpu_custom_call.1} parent=5 // pred_fallthru
        _
      %p213 = scmp.le.s32.totalorder 1, %s15
      %p214 = scmp.lt.s32.totalorder %s15, 3
      %p215 = pnand %p213, %p214
      %p216 = pneg %p215
      // Predicated region
      $region41: #{tpu_custom_call.1} parent=5 // pred_check
        _
      $region42: #{tpu_custom_call.1} parent=5 // pred_check_branch
        %218 = sbr.rel (%p215) target = $region44
      $region43: #{tpu_custom_call.1} parent=5 // pred_region
        %s219 = ssub.s32 %s15, 1
        %p220 = scmp.lt.s32.totalorder %s20, 1
        %s221 = scalar_select %p220, %s20, 1
        %s222 = smul.addr %s221, 8
        %s223 = scalar_lea.vmem %s0, %s222
        %p224 = pneg %p41
        %p225 = pneg %p38
        %p226 = pneg %p62
        %p227 = pneg %p59
        %p228 = pneg %p83
        %p229 = pneg %p80
        %p230 = pneg %p104
        %p231 = pneg %p101
        %p232 = pneg %p125
        %p233 = pneg %p122
        %p234 = pneg %p146
        %p235 = pneg %p143
        %p236 = pneg %p172
        %p237 = pneg %p169
        %s238 = sand.u32 %s159, 1
        %s239 = scalar_lea.sflag [#allocation3], %s238
        %s240 = sand.u32 %s159, 1
        %s241 = smul.addr %s240, 8
        %s242 = scalar_lea.vmem [#allocation2], %s241
        %p243 = scmp.lt.s32.totalorder %s20, 1
        %s244 = scalar_select %p243, %s20, 1
        %s245 = smul.addr %s244, 8
        %s246 = scalar_lea.vmem %s0, %s245
        %v247 = vld [vmem:[%s246] sm:$0xff]
        %vm248 = vcmask 261120
        %v249 = vsel %vm248, %v247, 0.0
        %250 = vadd.xlane.f32.xlu0 %v249
        %v251 = vpop.xlane.xlu0 %250
        %v252 = vrcp.pop 32.0
        %v253 = vmul.f32 %v251, %v252
        %v254 = vsub.f32 %v247, %v253
        %v255 = vmul.f32 %v254, %v254
        %v256 = vsel %vm248, %v255, 0.0
        %257 = vadd.xlane.f32.xlu0 %v256
        %v258 = vpop.xlane.xlu0 %257
        %v259 = vmul.f32 %v258, %v252
        %v260 = vadd.f32 %v259, 1e-05
        %v261 = vrsqrt.pop %v260
        %v262 = vmul.f32 %v254, %v261
        %v263 = vld [vmem:[%s1] sm:$0x1]
        %v265 = vlaneseq
        %v266 = vshrl.u32 %v265, 7
        %v267 = vsub.s32 0, %v266
        %v268 = vrot.slane %v263, %v267
        %v270 = vmul.f32 %v262, %v268
        %v271 = vld [vmem:[%s2] sm:$0x1]
        %v273 = vlaneseq
        %v274 = vshrl.u32 %v273, 7
        %v275 = vsub.s32 0, %v274
        %v276 = vrot.slane %v271, %v275
        %v278 = vadd.f32 %v270, %v276
        %280 = vrot.lane.b32.xlu0 %v278, 32
        %v281 = vpop.permute.xlu0 %280
        %283 = vrot.lane.b32.xlu0 %v278, 64
        %v284 = vpop.permute.xlu0 %283
        %286 = vrot.lane.b32.xlu0 %v278, 96
        %v287 = vpop.permute.xlu0 %286
        %v289 = vsel %vm248, %v278, %v281
        %vm290 = vcmask 523264
        %v291 = vsel %vm290, %v289, %v284
        %vm292 = vcmask 785408
        %v293 = vsel %vm292, %v291, %v287
        %v294 = vld [vmem:[%s3] sm:$0x3]
        %v296 = vlaneseq
        %v297 = vshrl.u32 %v296, 7
        %v298 = vsub.s32 0, %v297
        %v299 = vrot.slane %v294, %v298
        %v300 = vlaneseq
        %v301 = vshrl.u32 %v300, 7
        %v302 = vsub.s32 1, %v301
        %v303 = vrot.slane %v294, %v302
        %v306 = vsub.f32 %v293, %v299
        %v307 = vsub.f32 %v293, %v303
        %v308 = vmul.f32 %v306, %v306
        %v309 = vmul.f32 %v307, %v307
        %v310 = vsub.f32 0.0, %v308
        %v311 = vsub.f32 0.0, %v309
        %v312 = vmul.f32 %v310, 1.442695
        %v313 = vpow.pop %v312
        %v314 = vmul.f32 %v311, 1.442695
        %v315 = vpow.pop %v314
        %v316 = vxor.u32 %v247, 2147483648
        %v317 = vmul.f32 %v316, 1.442695
        %v318 = vpow.pop %v317
        %v319 = vadd.f32 %v318, 1.0
        %v320 = vrcp.pop %v319
        %v321 = vmul.f32 1.0, %v320
        %v322 = vmul.f32 %v247, %v321
        %v323 = vld [vmem:[%s4] sm:$0xff]
        %v324 = vld [vmem:[%s4 + $0x8] sm:$0xff]
        %v325 = vld [vmem:[%s4 + $0x10] sm:$0xff]
        %v326 = vld [vmem:[%s4 + $0x18] sm:$0xff]
        %v327 = vld [vmem:[%s4 + $0x20] sm:$0xff]
        %v328 = vld [vmem:[%s4 + $0x28] sm:$0xff]
        %v329 = vld [vmem:[%s4 + $0x30] sm:$0xff]
        %v330 = vld [vmem:[%s4 + $0x38] sm:$0xff]
        %v331 = vld [vmem:[%s4 + $0x40] sm:$0xff]
        %v332 = vld [vmem:[%s4 + $0x48] sm:$0xff]
        %v333 = vld [vmem:[%s4 + $0x50] sm:$0xff]
        %v334 = vld [vmem:[%s4 + $0x58] sm:$0xff]
        %v335 = vld [vmem:[%s4 + $0x60] sm:$0xff]
        %v336 = vld [vmem:[%s4 + $0x68] sm:$0xff]
        %v337 = vld [vmem:[%s4 + $0x70] sm:$0xff]
        %v338 = vld [vmem:[%s4 + $0x78] sm:$0xff]
        %v339 = vld [vmem:[%s4 + $0x80] sm:$0xff]
        %v340 = vld [vmem:[%s4 + $0x88] sm:$0xff]
        %v341 = vld [vmem:[%s4 + $0x90] sm:$0xff]
        %v342 = vld [vmem:[%s4 + $0x98] sm:$0xff]
        %v343 = vld [vmem:[%s4 + $0xa0] sm:$0xff]
        %v344 = vld [vmem:[%s4 + $0xa8] sm:$0xff]
        %v345 = vld [vmem:[%s4 + $0xb0] sm:$0xff]
        %v346 = vld [vmem:[%s4 + $0xb8] sm:$0xff]
        %v347 = vld [vmem:[%s4 + $0xc0] sm:$0xff]
        %v348 = vld [vmem:[%s4 + $0xc8] sm:$0xff]
        %v349 = vld [vmem:[%s4 + $0xd0] sm:$0xff]
        %v350 = vld [vmem:[%s4 + $0xd8] sm:$0xff]
        %v351 = vld [vmem:[%s4 + $0xe0] sm:$0xff]
        %v352 = vld [vmem:[%s4 + $0xe8] sm:$0xff]
        %v353 = vld [vmem:[%s4 + $0xf0] sm:$0xff]
        %v354 = vld [vmem:[%s4 + $0xf8] sm:$0xff]
        %v355 = vld [vmem:[%s4 + $0x100] sm:$0xff]
        %v356 = vld [vmem:[%s4 + $0x108] sm:$0xff]
        %v357 = vld [vmem:[%s4 + $0x110] sm:$0xff]
        %v358 = vld [vmem:[%s4 + $0x118] sm:$0xff]
        %v359 = vld [vmem:[%s5] sm:$0x1]
        %v361 = vlaneseq
        %v362 = vshrl.u32 %v361, 7
        %v363 = vsub.s32 0, %v362
        %v364 = vrot.slane %v359, %v363
        %v367 = vsel %vm248, %v322, 0
        %369 = vmatprep.subr.mxu0 0.0
        %370 = vmatpush1.msra.mxu0 %v323
        %371 = vmatprep.subr.mxu0 0.0
        %372 = vmatpush1.msra.mxu0 %v324
        %373 = vmatprep.subr.mxu0 0.0
        %374 = vmatpush1.msra.mxu0 %v325
        %375 = vmatprep.subr.mxu0 0.0
        %376 = vmatpush1.msra.mxu0 %v326
        %377 = vmatprep.subr.mxu0 0.0
        %378 = vmatpush1.msra.mxu0 %v327
        %379 = vmatprep.subr.mxu0 0.0
        %380 = vmatpush1.msra.mxu0 %v328
        %381 = vmatprep.subr.mxu0 0.0
        %382 = vmatpush1.msra.mxu0 %v329
        %383 = vmatprep.subr.mxu0 0.0
        %384 = vmatpush1.msra.mxu0 %v330
        %385 = vmatprep.subr.mxu0 0.0
        %386 = vmatpush1.msra.mxu0 %v331
        %387 = vmatprep.subr.mxu0 0.0
        %388 = vmatpush1.msra.mxu0 %v332
        %389 = vmatprep.subr.mxu0 0.0
        %390 = vmatpush1.msra.mxu0 %v333
        %391 = vmatprep.subr.mxu0 0.0
        %392 = vmatpush1.msra.mxu0 %v334
        %393 = vmatprep.subr.mxu0 0.0
        %394 = vmatpush1.msra.mxu0 %v335
        %395 = vmatprep.subr.mxu0 0.0
        %396 = vmatpush1.msra.mxu0 %v336
        %397 = vmatprep.subr.mxu0 0.0
        %398 = vmatpush1.msra.mxu0 %v337
        %399 = vmatprep.subr.mxu0 0.0
        %400 = vmatpush1.msra.mxu0 %v338
        %401 = vmatprep.subr.mxu0 0.0
        %402 = vmatpush1.msra.mxu0 %v339
        %403 = vmatprep.subr.mxu0 0.0
        %404 = vmatpush1.msra.mxu0 %v340
        %405 = vmatprep.subr.mxu0 0.0
        %406 = vmatpush1.msra.mxu0 %v341
        %407 = vmatprep.subr.mxu0 0.0
        %408 = vmatpush1.msra.mxu0 %v342
        %409 = vmatprep.subr.mxu0 0.0
        %410 = vmatpush1.msra.mxu0 %v343
        %411 = vmatprep.subr.mxu0 0.0
        %412 = vmatpush1.msra.mxu0 %v344
        %413 = vmatprep.subr.mxu0 0.0
        %414 = vmatpush1.msra.mxu0 %v345
        %415 = vmatprep.subr.mxu0 0.0
        %416 = vmatpush1.msra.mxu0 %v346
        %417 = vmatprep.subr.mxu0 0.0
        %418 = vmatpush1.msra.mxu0 %v347
        %419 = vmatprep.subr.mxu0 0.0
        %420 = vmatpush1.msra.mxu0 %v348
        %421 = vmatprep.subr.mxu0 0.0
        %422 = vmatpush1.msra.mxu0 %v349
        %423 = vmatprep.subr.mxu0 0.0
        %424 = vmatpush1.msra.mxu0 %v350
        %425 = vmatprep.subr.mxu0 0.0
        %426 = vmatpush1.msra.mxu0 %v351
        %427 = vmatprep.subr.mxu0 0.0
        %428 = vmatpush1.msra.mxu0 %v352
        %429 = vmatprep.subr.mxu0 0.0
        %430 = vmatpush1.msra.mxu0 %v353
        %431 = vmatprep.subr.mxu0 0.0
        %432 = vmatpush1.msra.mxu0 %v354
        %433 = vmatprep.mubr.f32.mxu0 %v315
        %434 = vmatmul.mubr.f32.gmra.mrb[0].mxu0 %v313
        %v435 = vpop.f32.mrb[0].mxu0
        %v436 = vadd.f32 %v364, %v435
        %v437 = vpop.f32.mrb[0].mxu0
        %438 = vdwg.mxu0
        %439 = vmatprep.subr.mxu0 0.0
        %440 = vmatpush1.msra.mxu0 %v355
        %441 = vmatprep.subr.mxu0 0.0
        %442 = vmatpush1.msra.mxu0 %v356
        %443 = vmatprep.subr.mxu0 0.0
        %444 = vmatpush1.msra.mxu0 %v357
        %445 = vmatprep.subr.mxu0 0.0
        %446 = vmatpush1.msra.mxu0 %v358
        %447 = vmatprep.subr.mxu0 0.0
        %448 = vmatpush1.msra.mxu0 0.0
        %449 = vmatprep.subr.mxu0 0.0
        %450 = vmatpush1.msra.mxu0 0.0
        %451 = vmatprep.subr.mxu0 0.0
        %452 = vmatpush1.msra.mxu0 0.0
        %453 = vmatprep.subr.mxu0 0.0
        %454 = vmatpush1.msra.mxu0 0.0
        %455 = vmatprep.subr.mxu0 0.0
        %456 = vmatpush1.msra.mxu0 0.0
        %457 = vmatprep.subr.mxu0 0.0
        %458 = vmatpush1.msra.mxu0 0.0
        %459 = vmatprep.subr.mxu0 0.0
        %460 = vmatpush1.msra.mxu0 0.0
        %461 = vmatprep.subr.mxu0 0.0
        %462 = vmatpush1.msra.mxu0 0.0
        %463 = vmatprep.subr.mxu0 0.0
        %464 = vmatpush1.msra.mxu0 0.0
        %465 = vmatprep.subr.mxu0 0.0
        %466 = vmatpush1.msra.mxu0 0.0
        %467 = vmatprep.subr.mxu0 0.0
        %468 = vmatpush1.msra.mxu0 0.0
        %469 = vmatprep.subr.mxu0 0.0
        %470 = vmatpush1.msra.mxu0 0.0
        %471 = vmatprep.subr.mxu0 0.0
        %472 = vmatpush1.msra.mxu0 0.0
        %473 = vmatprep.subr.mxu0 0.0
        %474 = vmatpush1.msra.mxu0 0.0
        %475 = vmatprep.subr.mxu0 0.0
        %476 = vmatpush1.msra.mxu0 0.0
        %477 = vmatprep.subr.mxu0 0.0
        %478 = vmatpush1.msra.mxu0 0.0
        %479 = vmatprep.subr.mxu0 0.0
        %480 = vmatpush1.msra.mxu0 0.0
        %481 = vmatprep.subr.mxu0 0.0
        %482 = vmatpush1.msra.mxu0 0.0
        %483 = vmatprep.subr.mxu0 0.0
        %484 = vmatpush1.msra.mxu0 0.0
        %485 = vmatprep.subr.mxu0 0.0
        %486 = vmatpush1.msra.mxu0 0.0
        %487 = vmatprep.subr.mxu0 0.0
        %488 = vmatpush1.msra.mxu0 0.0
        %489 = vmatprep.subr.mxu0 0.0
        %490 = vmatpush1.msra.mxu0 0.0
        %491 = vmatprep.subr.mxu0 0.0
        %492 = vmatpush1.msra.mxu0 0.0
        %493 = vmatprep.subr.mxu0 0.0
        %494 = vmatpush1.msra.mxu0 0.0
        %495 = vmatprep.subr.mxu0 0.0
        %496 = vmatpush1.msra.mxu0 0.0
        %497 = vmatprep.subr.mxu0 0.0
        %498 = vmatpush1.msra.mxu0 0.0
        %499 = vmatprep.subr.mxu0 0.0
        %500 = vmatpush1.msra.mxu0 0.0
        %501 = vmatprep.subr.mxu0 0.0
        %502 = vmatpush1.msra.mxu0 0.0
        %503 = vmatprep.mubr.f32.mxu0 0.0
        %504 = vmatmul.mubr.f32.gmra.mrb[0].mxu0 %v367
        %v505 = vpop.f32.mrb[0].mxu0
        %v506 = vadd.f32 %v436, %v505
        %v507 = vpop.f32.mrb[0].mxu0
        %508 = vdwg.mxu0
        %509 = vst.msk [vmem:[%s242] sm:$0xff] %vm290, %v506
        %s510 = sand.u32 %s159, 1
        %s511 = scalar_lea.sflag [#allocation3], %s510
        %s512 = sand.u32 %s159, 1
        %s513 = smul.addr %s512, 8
        %s514 = scalar_lea.vmem [#allocation2], %s513
        // Predicated region
        $region45: #{tpu_custom_call.1} parent=43 // pred_check
          %p515 = pneg %p169
        $region46: #{tpu_custom_call.1} parent=43 // pred_check_branch
          %517 = sbr.rel (%p515) target = $region48
        $region47: #{tpu_custom_call.1} parent=43 // pred_region
          %s519 = ssub.s32 128, 128
          %520 = vsyncadd %s511, %s519
          %s521 = smul.addr %s20, 128
          %s522 = scalar_lea.hbm %s6, %s521
          %s524 = sshll.u32 %s514, 4
          %s525 = int_to_ptr.vmem [resolvable:$true] %s524
          %527 = dma.vmem_to_hbm [thread:$0]  %s525, 128, %s522, %s511
        $region48: #{tpu_custom_call.1} parent=43 // pred_fallthru
          _
      $region44: #{tpu_custom_call.1} parent=5 // pred_fallthru
        _
      %p528 = scmp.le.s32.totalorder 2, %s15
      // Predicated region
      $region49: #{tpu_custom_call.1} parent=5 // pred_check
        %p529 = pneg %p528
      $region50: #{tpu_custom_call.1} parent=5 // pred_check_branch
        %531 = sbr.rel (%p529) target = $region52
      $region51: #{tpu_custom_call.1} parent=5 // pred_region
        %s532 = ssub.s32 %s15, 2
        // Predicated region
        $region53: #{tpu_custom_call.1} parent=51 // pred_check
          %p533 = pneg %p175
        $region54: #{tpu_custom_call.1} parent=51 // pred_check_branch
          %535 = sbr.rel (%p533) target = $region56
        $region55: #{tpu_custom_call.1} parent=51 // pred_region
          %s536 = sand.u32 %s160, 1
          %s537 = scalar_lea.sflag [#allocation3], %s536
          %s538 = sand.u32 %s160, 1
          %s539 = smul.addr %s538, 8
          %s540 = scalar_lea.vmem [#allocation2], %s539
          %541 = dma.done %s537, 128
        $region56: #{tpu_custom_call.1} parent=51 // pred_fallthru
          _
      $region52: #{tpu_custom_call.1} parent=5 // pred_fallthru
        _
    $region6: #{tpu_custom_call.1} parent=1 // loop_footer
      %s19 = sadd.s32 1, %s15
    $region7: #{tpu_custom_call.1} parent=1 // loop_footer_branch
      %14 = sbr.rel target = $region3
    $region8: #{tpu_custom_call.1} parent=1 // loop_exit
      _
    %542 = vsyncpa [#allocation3], 1
    %s543 = scalar_lea.sflag [#allocation3], 1
    %544 = vsyncpa %s543, 1

</llo_original>
